<compile_context>
chip_gen: v7x
topology: tpu7x:2x2x1
jax: 0.10.0
libtpu: 0.0.40
codegen_flags: <defaults>
</compile_context>

<pallas_src>
import jax
import jax.numpy as jnp
from jax.experimental import pallas as pl
from jax.experimental.pallas import tpu as pltpu


def _mf_kernel(uid_ref, iid_ref,          # scalar-prefetch ids (SMEM)
               user_hbm, item_hbm,        # factor tables (HBM, pl.ANY)
               out_ref,                   # (1, tile_b) lane-dense output block
               u_buf, i_buf, sems):       # VMEM gather buffers + DMA semaphores
    tile_b, f_pad = u_buf.shape
    base = pl.program_id(0) * tile_b

    # Issue all row-gather DMAs for this batch tile.  User-row copies share the
    # counting semaphore sems[0], item-row copies share sems[1]; every copy has
    # the identical (1, f_pad) shape, so N starts are matched by N waits below.
    @pl.loop(0, tile_b)
    def _issue(r):
        u_id = uid_ref[base + r]
        i_id = iid_ref[base + r]
        pltpu.make_async_copy(user_hbm.at[pl.ds(u_id, 1), :],
                              u_buf.at[pl.ds(r, 1), :], sems.at[0]).start()
        pltpu.make_async_copy(item_hbm.at[pl.ds(i_id, 1), :],
                              i_buf.at[pl.ds(r, 1), :], sems.at[1]).start()

    # Drain: retire one row-sized copy per wait on each shared semaphore.
    @pl.loop(0, tile_b)
    def _drain(r):
        pltpu.make_async_copy(user_hbm.at[pl.ds(0, 1), :],
                              u_buf.at[pl.ds(r, 1), :], sems.at[0]).wait()
        pltpu.make_async_copy(item_hbm.at[pl.ds(0, 1), :],
                              i_buf.at[pl.ds(r, 1), :], sems.at[1]).wait()

    # Elementwise product on the VPU, then reduce over the (padded) factor axis
    # with a ones-matmul that lands the batch on the lane axis -> one unmasked
    # lane-dense (1, tile_b) store.  dot(A, B.T) is the standard MXU pattern.
    prod = u_buf[...] * i_buf[...]                                 # (tile_b, f_pad)
    ones = jnp.ones((8, f_pad), dtype=jnp.float32)
    red = jnp.dot(ones, prod.T, preferred_element_type=jnp.float32)  # (8, tile_b)
    out_ref[...] = red[0:1, :]


def matrix_factorization_forward(data, user_factors, item_factors, *,
                                 tile_b=128):
    """Pallas equivalent of MatrixFactorization.forward(data) -> (B,) float32."""
    n_users, n_factors = user_factors.shape
    n_items, _ = item_factors.shape
    B = data.shape[0]

    # Pad the factor axis to a full lane width; zeros do not change the result.
    f_pad = max(128, pl.cdiv(n_factors, 128) * 128)
    user_w = jnp.pad(user_factors.astype(jnp.float32),
                     ((0, 0), (0, f_pad - n_factors)))
    item_w = jnp.pad(item_factors.astype(jnp.float32),
                     ((0, 0), (0, f_pad - n_factors)))

    # Clamp ids (guards against OOB DMA) and pad the batch to whole tiles with
    # the safe id 0; the padded rows are discarded after the kernel.
    users = jnp.clip(data[:, 0].astype(jnp.int32), 0, n_users - 1)
    items = jnp.clip(data[:, 1].astype(jnp.int32), 0, n_items - 1)
    n_tiles = pl.cdiv(B, tile_b)
    b_pad = n_tiles * tile_b
    users = jnp.pad(users, (0, b_pad - B))
    items = jnp.pad(items, (0, b_pad - B))

    grid_spec = pltpu.PrefetchScalarGridSpec(
        num_scalar_prefetch=2,                       # users, items -> SMEM
        grid=(n_tiles,),
        in_specs=[
            pl.BlockSpec(memory_space=pl.ANY),       # user table stays in HBM
            pl.BlockSpec(memory_space=pl.ANY),       # item table stays in HBM
        ],
        # Lane-dense output: batch on the lane axis, (1, tile_b) block per step.
        out_specs=pl.BlockSpec((1, tile_b), lambda t, u_ids, i_ids: (0, t)),
        scratch_shapes=[
            pltpu.VMEM((tile_b, f_pad), jnp.float32),   # gathered user rows
            pltpu.VMEM((tile_b, f_pad), jnp.float32),   # gathered item rows
            pltpu.SemaphoreType.DMA((2,)),              # user / item DMA sems
        ],
    )

    out = pl.pallas_call(
        _mf_kernel,
        out_shape=jax.ShapeDtypeStruct((1, b_pad), jnp.float32),
        grid_spec=grid_spec,
        compiler_params=pltpu.CompilerParams(
            dimension_semantics=("parallel",),          # megacore on v7x
            vmem_limit_bytes=16 * 1024 * 1024,
        ),
    )(users, items, user_w, item_w)

    return out[0, :B]


if __name__ == "__main__":
    # Module shapes: Embedding(n_users, n_factors), Embedding(n_items, n_factors)
    n_users, n_items, n_factors = 32, 48, 20
    B = 8

    key = jax.random.PRNGKey(0)
    k_uw, k_iw, k_u, k_i = jax.random.split(key, 4)

    # Deterministic init mirroring .uniform_(0, 0.05)
    user_factors = jax.random.uniform(
        k_uw, (n_users, n_factors), dtype=jnp.float32, minval=0.0, maxval=0.05)
    item_factors = jax.random.uniform(
        k_iw, (n_items, n_factors), dtype=jnp.float32, minval=0.0, maxval=0.05)

    users = jax.random.randint(k_u, (B,), 0, n_users, dtype=jnp.int32)
    items = jax.random.randint(k_i, (B,), 0, n_items, dtype=jnp.int32)
    data = jnp.stack([users, items], axis=1)                 # (B, 2) int32

    out = matrix_factorization_forward(data, user_factors, item_factors)
    out = jax.block_until_ready(out)

    # Pure-JAX reference of the PyTorch forward.
    ref = (user_factors[data[:, 0]] * item_factors[data[:, 1]]).sum(axis=1)
    assert out.shape == (B,)
    # Gather and elementwise product are exact f32; tolerance leaves room for a
    # possible reduced-precision MXU pass in the final ones-matmul reduction.
    assert jnp.allclose(out, ref, atol=1e-4, rtol=1e-2), (out, ref)

    print("KERNEL_OK")
</pallas_src>

<mosaic_0001>
module attributes {stable_mosaic.version = 11 : i64} {
  func.func @_mf_kernel(%arg0: i32, %arg1: memref<128xi32, #tpu.memory_space<smem>>, %arg2: memref<128xi32, #tpu.memory_space<smem>>, %arg3: memref<32x128xf32, #tpu.memory_space<any>>, %arg4: memref<48x128xf32, #tpu.memory_space<any>>, %arg5: memref<1x128xf32, #tpu.memory_space<vmem>>, %arg6: memref<128x128xf32, #tpu.memory_space<vmem>>, %arg7: memref<128x128xf32, #tpu.memory_space<vmem>>, %arg8: memref<2x!tpu.dma_semaphore, #tpu.memory_space<semaphore_mem>>) attributes {dimension_semantics = [#tpu.dimension_semantics<parallel>], iteration_bounds = array<i64: 1>, scalar_prefetch = 2 : i64, scratch_operands = 3 : i64, tpu.core_type = #tpu.core_type<tc>, window_params = [{}, {}, {transform_indices = @transform_2, window_bounds = array<i64: 1, 128>}]} {
    %c128_i32 = arith.constant 128 : i32
    %0 = arith.muli %arg0, %c128_i32 : i32
    %c0_i32 = arith.constant 0 : i32
    %c128_i32_0 = arith.constant 128 : i32
    %1 = arith.addi %c0_i32, %c128_i32_0 : i32
    %c1_i32 = arith.constant 1 : i32
    scf.for %arg9 = %c0_i32 to %1 step %c1_i32  : i32 {
      %c1_i32_12 = arith.constant 1 : i32
      %11 = arith.muli %arg9, %c1_i32_12 : i32
      %c0_i32_13 = arith.constant 0 : i32
      %12 = arith.addi %c0_i32_13, %11 : i32
      %13 = arith.addi %0, %12 : i32
      %14 = arith.index_cast %13 : i32 to index
      %15 = memref.load %arg1[%14] : memref<128xi32, #tpu.memory_space<smem>>
      %16 = arith.addi %0, %12 : i32
      %17 = arith.index_cast %16 : i32 to index
      %18 = memref.load %arg2[%17] : memref<128xi32, #tpu.memory_space<smem>>
      %c0_i32_14 = arith.constant 0 : i32
      %c0_i32_15 = arith.constant 0 : i32
      %19 = tpu.memref_slice %arg3[%15, %c0_i32_15] : memref<32x128xf32, #tpu.memory_space<any>> -> memref<1x128xf32, #tpu.memory_space<any>>
      %c0_i32_16 = arith.constant 0 : i32
      %20 = tpu.memref_slice %arg6[%12, %c0_i32_16] : memref<128x128xf32, #tpu.memory_space<vmem>> -> memref<1x128xf32, #tpu.memory_space<vmem>>
      %21 = tpu.memref_slice %arg8[%c0_i32_14] : memref<2x!tpu.dma_semaphore, #tpu.memory_space<semaphore_mem>> -> memref<1x!tpu.dma_semaphore, #tpu.memory_space<semaphore_mem>>
      %22 = tpu.memref_squeeze %21 : memref<1x!tpu.dma_semaphore, #tpu.memory_space<semaphore_mem>> -> memref<!tpu.dma_semaphore, #tpu.memory_space<semaphore_mem>>
      tpu.enqueue_dma source(%19 : memref<1x128xf32, #tpu.memory_space<any>>) target(%20 : memref<1x128xf32, #tpu.memory_space<vmem>>) target_semaphore(%22 : memref<!tpu.dma_semaphore, #tpu.memory_space<semaphore_mem>>)
      %c1_i32_17 = arith.constant 1 : i32
      %c0_i32_18 = arith.constant 0 : i32
      %23 = tpu.memref_slice %arg4[%18, %c0_i32_18] : memref<48x128xf32, #tpu.memory_space<any>> -> memref<1x128xf32, #tpu.memory_space<any>>
      %c0_i32_19 = arith.constant 0 : i32
      %24 = tpu.memref_slice %arg7[%12, %c0_i32_19] : memref<128x128xf32, #tpu.memory_space<vmem>> -> memref<1x128xf32, #tpu.memory_space<vmem>>
      %25 = tpu.memref_slice %arg8[%c1_i32_17] : memref<2x!tpu.dma_semaphore, #tpu.memory_space<semaphore_mem>> -> memref<1x!tpu.dma_semaphore, #tpu.memory_space<semaphore_mem>>
      %26 = tpu.memref_squeeze %25 : memref<1x!tpu.dma_semaphore, #tpu.memory_space<semaphore_mem>> -> memref<!tpu.dma_semaphore, #tpu.memory_space<semaphore_mem>>
      tpu.enqueue_dma source(%23 : memref<1x128xf32, #tpu.memory_space<any>>) target(%24 : memref<1x128xf32, #tpu.memory_space<vmem>>) target_semaphore(%26 : memref<!tpu.dma_semaphore, #tpu.memory_space<semaphore_mem>>)
    }
    %c128_i32_1 = arith.constant 128 : i32
    %c0_i32_2 = arith.constant 0 : i32
    %c128_i32_3 = arith.constant 128 : i32
    %2 = arith.addi %c0_i32_2, %c128_i32_3 : i32
    %c1_i32_4 = arith.constant 1 : i32
    scf.for %arg9 = %c0_i32_2 to %2 step %c1_i32_4  : i32 {
      %c1_i32_12 = arith.constant 1 : i32
      %11 = arith.muli %arg9, %c1_i32_12 : i32
      %c0_i32_13 = arith.constant 0 : i32
      %12 = arith.addi %c0_i32_13, %11 : i32
      %c0_i32_14 = arith.constant 0 : i32
      %c0_i32_15 = arith.constant 0 : i32
      %c0_i32_16 = arith.constant 0 : i32
      %13 = tpu.memref_slice %arg3[%c0_i32_15, %c0_i32_16] : memref<32x128xf32, #tpu.memory_space<any>> -> memref<1x128xf32, #tpu.memory_space<any>>
      %c0_i32_17 = arith.constant 0 : i32
      %14 = tpu.memref_slice %arg6[%12, %c0_i32_17] : memref<128x128xf32, #tpu.memory_space<vmem>> -> memref<1x128xf32, #tpu.memory_space<vmem>>
      %15 = tpu.memref_slice %arg8[%c0_i32_14] : memref<2x!tpu.dma_semaphore, #tpu.memory_space<semaphore_mem>> -> memref<1x!tpu.dma_semaphore, #tpu.memory_space<semaphore_mem>>
      %16 = tpu.memref_squeeze %15 : memref<1x!tpu.dma_semaphore, #tpu.memory_space<semaphore_mem>> -> memref<!tpu.dma_semaphore, #tpu.memory_space<semaphore_mem>>
      tpu.wait_dma2 semaphore(%16 : memref<!tpu.dma_semaphore, #tpu.memory_space<semaphore_mem>>) src(%13 : memref<1x128xf32, #tpu.memory_space<any>>) dst(%14 : memref<1x128xf32, #tpu.memory_space<vmem>>)
      %c1_i32_18 = arith.constant 1 : i32
      %c0_i32_19 = arith.constant 0 : i32
      %c0_i32_20 = arith.constant 0 : i32
      %17 = tpu.memref_slice %arg4[%c0_i32_19, %c0_i32_20] : memref<48x128xf32, #tpu.memory_space<any>> -> memref<1x128xf32, #tpu.memory_space<any>>
      %c0_i32_21 = arith.constant 0 : i32
      %18 = tpu.memref_slice %arg7[%12, %c0_i32_21] : memref<128x128xf32, #tpu.memory_space<vmem>> -> memref<1x128xf32, #tpu.memory_space<vmem>>
      %19 = tpu.memref_slice %arg8[%c1_i32_18] : memref<2x!tpu.dma_semaphore, #tpu.memory_space<semaphore_mem>> -> memref<1x!tpu.dma_semaphore, #tpu.memory_space<semaphore_mem>>
      %20 = tpu.memref_squeeze %19 : memref<1x!tpu.dma_semaphore, #tpu.memory_space<semaphore_mem>> -> memref<!tpu.dma_semaphore, #tpu.memory_space<semaphore_mem>>
      tpu.wait_dma2 semaphore(%20 : memref<!tpu.dma_semaphore, #tpu.memory_space<semaphore_mem>>) src(%17 : memref<1x128xf32, #tpu.memory_space<any>>) dst(%18 : memref<1x128xf32, #tpu.memory_space<vmem>>)
    }
    %c128_i32_5 = arith.constant 128 : i32
    %c0 = arith.constant 0 : index
    %c0_6 = arith.constant 0 : index
    %3 = vector.load %arg6[%c0, %c0_6] : memref<128x128xf32, #tpu.memory_space<vmem>>, vector<128x128xf32>
    %c0_7 = arith.constant 0 : index
    %c0_8 = arith.constant 0 : index
    %4 = vector.load %arg7[%c0_7, %c0_8] : memref<128x128xf32, #tpu.memory_space<vmem>>, vector<128x128xf32>
    %5 = arith.mulf %3, %4 : vector<128x128xf32>
    %cst = arith.constant 1.000000e+00 : f32
    %6 = vector.broadcast %cst : f32 to vector<8x128xf32>
    %7 = tpu.transpose %5, [1, 0] : vector<128x128xf32> -> vector<128x128xf32>
    %cst_9 = arith.constant dense<0.000000e+00> : vector<8x128xf32>
    %8 = tpu.matmul %6, %7, %cst_9 {dimension_numbers = #tpu.dot_dimension_numbers<[1], [0], [0], [1], [0, 0, 1, 1], [], []>} : vector<8x128xf32>, vector<128x128xf32>, vector<8x128xf32> -> vector<8x128xf32>
    %9 = vector.extract_strided_slice %8 {offsets = [0, 0], sizes = [1, 128], strides = [1, 1]} : vector<8x128xf32> to vector<1x128xf32>
    %c0_10 = arith.constant 0 : index
    %c0_11 = arith.constant 0 : index
    %10 = vector.load %arg5[%c0_10, %c0_11] : memref<1x128xf32, #tpu.memory_space<vmem>>, vector<1x128xf32>
    tpu.vector_store %arg5[%c0_10, %c0_11], %9 {strides = array<i32>} : memref<1x128xf32, #tpu.memory_space<vmem>>, vector<1x128xf32>,
    return
  }
  func.func @transform_2(%arg0: i32, %arg1: memref<128xi32, #tpu.memory_space<smem>>, %arg2: memref<128xi32, #tpu.memory_space<smem>>) -> (i32, i32) {
    %c0_i32 = arith.constant 0 : i32
    %c0_i32_0 = arith.constant 0 : i32
    return %c0_i32, %arg0 : i32, i32
  }
}

</mosaic_0001>

<llo_original>
// kernel: tpu_custom_call.1
$region0: #{tpu_custom_call.1}
  #allocation0 [shape = 'u32[]', space=smem, size = 0x4, offset = 0x4, fixed_abs, tag = 'smem constant byte address 0x4 - core index']
  #allocation1 [shape = 'u32[144,128]{1,0:T(1,128)}', space=vmem, size = 0x12000, scoped, tag = 'internal scratch']
  #allocation2 [shape = 'f32[128,128]{1,0:T(8,128)}', space=vmem, size = 0x10000, scoped, tag = 'scratch operand']
  #allocation3 [shape = 'f32[128,128]{1,0:T(8,128)}', space=vmem, size = 0x10000, scoped, tag = 'scratch operand']
  #allocation4 [shape = 's32[2]{0}', space=sflag, size = 0x8, scoped, tag = 'scratch operand']
  #allocation5 [shape = 's32[1]{0}', space=sflag, size = 0x4, scoped, tag = 'scoped memory for tpu_custom_call.1']
  #allocation6 [shape = 'u8[512]{0}', space=smem, size = 0x200, scoped, tag = 'prefetched SMEM operand 0']
  #allocation7 [shape = 'u8[512]{0}', space=smem, size = 0x200, scoped, tag = 'prefetched SMEM operand 1']
  #allocation10 [shape = 's32[]', space=sflag, size = 0x4, offset = 0, fixed_abs, tag = 'sflag constant byte address 0x0 - dummy sync flag']
  #allocation11 [shape = 's32[]', space=sflag, size = 0x4, offset = 0, fixed_abs, tag = 'sflag constant byte address 0x0 - dummy sync flag']
  #allocation12 [shape = 'u32[]', space=smem, size = 0x4, offset = 0x44, fixed_abs, tag = 'smem constant byte address 0x44 - assertion arg 0']
  #allocation13 [shape = 'u32[]', space=smem, size = 0x4, offset = 0x48, fixed_abs, tag = 'smem constant byte address 0x48 - assertion arg 1']
  #allocation14 [shape = 's32[]', space=sflag, size = 0x4, offset = 0, fixed_abs, tag = 'sflag constant byte address 0x0 - dummy sync flag']
  #allocation15 [shape = 's32[]', space=sflag, size = 0x4, offset = 0, fixed_abs, tag = 'sflag constant byte address 0x0 - dummy sync flag']
  %s0 = inlined_call_operand.hbm [shape: s32[128], index: 0, kind: input, shape index: {}]
  %s1 = inlined_call_operand.vmem [shape: s32[128], index: 1, kind: input, shape index: {}]
  %s2 = inlined_call_operand.hbm [shape: f32[32,128], index: 2, kind: input, shape index: {}]
  %s3 = inlined_call_operand.hbm [shape: f32[48,128], index: 3, kind: input, shape index: {}]
  %s4 = inlined_call_operand.hbm [shape: f32[1,128], index: 4, kind: output, shape index: {}]
  %s5 = sld [smem:[#allocation0]]
  $region32: #{tpu_custom_call.1} parent=0
    _
  %s7 = ssub.s32 1, %s5
  %s8 = scalar_select 0, %s7, %s5
  %10 = dma.hbm_to_smem %s0, 16, [#allocation6], [#allocation5]
  %s11 = sshll.u32 %s1, 4
  %s12 = int_to_ptr.vmem [resolvable:$true] %s11
  %14 = dma.vmem_to_smem %s12, 16, [#allocation7], [#allocation5]
  %15 = dma.done [#allocation5], 32
  %16 = sfence
  $region1: #{tpu_custom_call.1} parent=0
    #allocation8 [shape = 'u8[512]{0}', space=vmem, size = 0x400, scoped, tag = 'output window, operand 0, single buffered']
    #allocation9 [shape = 's32[1]{0}', space=sflag, size = 0x4, scoped, tag = 'scoped memory for tpu_custom_call.1']
    %17 = vsyncpa [#allocation9], 0
    %s18 = smul.u32 0, 128
    loop: start=0, step=1, limit=128
    $region2: #{tpu_custom_call.1} parent=1 // loop_pre_header
      _
    $region3: #{tpu_custom_call.1} parent=1 // loop_header
      %s20 = sphi 0, %s24
      %p21 = scmp.ge.s32.totalorder %s20, 128
    $region4: #{tpu_custom_call.1} parent=1 // loop_header_branch
      %23 = sbr.rel (%p21) target = $region8
    $region5: #{tpu_custom_call.1} parent=1 // loop_body
      %s25 = sadd.s32 %s18, %s20
      %s26 = sld [smem:[#allocation6 + %s25]]
      %s27 = sld [smem:[#allocation7 + %s25]]
      %s28 = smul.addr %s26, 16
      %s29 = scalar_lea.hbm %s2, %s28
      %s30 = scalar_lea.vmem [#allocation2], %s20
      // Predicated region
      $region9: #{tpu_custom_call.1} parent=5 // pred_check
        _
      $region10: #{tpu_custom_call.1} parent=5 // pred_check_branch
        %32 = sbr.rel target = $region12
      $region11: #{tpu_custom_call.1} parent=5 // pred_region
        %33 = sst [smem:[#allocation12]] [#allocation11]
        %34 = sst [smem:[#allocation13]] [#allocation10]
      $region12: #{tpu_custom_call.1} parent=5 // pred_fallthru
        _
      %36 = shalt.err (0)
      %s38 = sshll.u32 %s30, 4
      %s39 = int_to_ptr.vmem [resolvable:$true] %s38
      %41 = dma.hbm_to_vmem [thread:$0]  %s29, 16, %s39, [#allocation4]
      %s42 = smul.addr %s27, 16
      %s43 = scalar_lea.hbm %s3, %s42
      %s44 = scalar_lea.vmem [#allocation3], %s20
      %s45 = scalar_lea.sflag [#allocation4], 1
      // Predicated region
      $region13: #{tpu_custom_call.1} parent=5 // pred_check
        _
      $region14: #{tpu_custom_call.1} parent=5 // pred_check_branch
        %47 = sbr.rel target = $region16
      $region15: #{tpu_custom_call.1} parent=5 // pred_region
        %48 = sst [smem:[#allocation12]] [#allocation15]
        %49 = sst [smem:[#allocation13]] [#allocation14]
      $region16: #{tpu_custom_call.1} parent=5 // pred_fallthru
        _
      %51 = shalt.err (0)
      %s53 = sshll.u32 %s44, 4
      %s54 = int_to_ptr.vmem [resolvable:$true] %s53
      %56 = dma.hbm_to_vmem [thread:$0]  %s43, 16, %s54, %s45
    $region6: #{tpu_custom_call.1} parent=1 // loop_footer
      %s24 = sadd.s32 1, %s20
    $region7: #{tpu_custom_call.1} parent=1 // loop_footer_branch
      %19 = sbr.rel target = $region3
    $region8: #{tpu_custom_call.1} parent=1 // loop_exit
      _
    loop: start=0, step=1, limit=128
    $region17: #{tpu_custom_call.1} parent=1 // loop_pre_header
      _
    $region18: #{tpu_custom_call.1} parent=1 // loop_header
      %s58 = sphi 0, %s62
      %p59 = scmp.ge.s32.totalorder %s58, 128
    $region19: #{tpu_custom_call.1} parent=1 // loop_header_branch
      %61 = sbr.rel (%p59) target = $region23
    $region20: #{tpu_custom_call.1} parent=1 // loop_body
      %s63 = smul.u32 1, 1
      %s64 = sshll.u32 %s63, 4
      %65 = dma.done [#allocation4], %s64
      %s66 = scalar_lea.sflag [#allocation4], 1
      %s67 = sshll.u32 %s63, 4
      %68 = dma.done %s66, %s67
    $region21: #{tpu_custom_call.1} parent=1 // loop_footer
      %s62 = sadd.s32 1, %s58
    $region22: #{tpu_custom_call.1} parent=1 // loop_footer_branch
      %57 = sbr.rel target = $region18
    $region23: #{tpu_custom_call.1} parent=1 // loop_exit
      _
    %v69 = vld [vmem:[#allocation2] sm:$0xff]
    %v70 = vld [vmem:[#allocation2 + $0x8] sm:$0xff]
    %v71 = vld [vmem:[#allocation2 + $0x10] sm:$0xff]
    %v72 = vld [vmem:[#allocation2 + $0x18] sm:$0xff]
    %v73 = vld [vmem:[#allocation2 + $0x20] sm:$0xff]
    %v74 = vld [vmem:[#allocation2 + $0x28] sm:$0xff]
    %v75 = vld [vmem:[#allocation2 + $0x30] sm:$0xff]
    %v76 = vld [vmem:[#allocation2 + $0x38] sm:$0xff]
    %v77 = vld [vmem:[#allocation2 + $0x40] sm:$0xff]
    %v78 = vld [vmem:[#allocation2 + $0x48] sm:$0xff]
    %v79 = vld [vmem:[#allocation2 + $0x50] sm:$0xff]
    %v80 = vld [vmem:[#allocation2 + $0x58] sm:$0xff]
    %v81 = vld [vmem:[#allocation2 + $0x60] sm:$0xff]
    %v82 = vld [vmem:[#allocation2 + $0x68] sm:$0xff]
    %v83 = vld [vmem:[#allocation2 + $0x70] sm:$0xff]
    %v84 = vld [vmem:[#allocation2 + $0x78] sm:$0xff]
    %v85 = vld [vmem:[#allocation3] sm:$0xff]
    %v86 = vld [vmem:[#allocation3 + $0x8] sm:$0xff]
    %v87 = vld [vmem:[#allocation3 + $0x10] sm:$0xff]
    %v88 = vld [vmem:[#allocation3 + $0x18] sm:$0xff]
    %v89 = vld [vmem:[#allocation3 + $0x20] sm:$0xff]
    %v90 = vld [vmem:[#allocation3 + $0x28] sm:$0xff]
    %v91 = vld [vmem:[#allocation3 + $0x30] sm:$0xff]
    %v92 = vld [vmem:[#allocation3 + $0x38] sm:$0xff]
    %v93 = vld [vmem:[#allocation3 + $0x40] sm:$0xff]
    %v94 = vld [vmem:[#allocation3 + $0x48] sm:$0xff]
    %v95 = vld [vmem:[#allocation3 + $0x50] sm:$0xff]
    %v96 = vld [vmem:[#allocation3 + $0x58] sm:$0xff]
    %v97 = vld [vmem:[#allocation3 + $0x60] sm:$0xff]
    %v98 = vld [vmem:[#allocation3 + $0x68] sm:$0xff]
    %v99 = vld [vmem:[#allocation3 + $0x70] sm:$0xff]
    %v100 = vld [vmem:[#allocation3 + $0x78] sm:$0xff]
    %v101 = vmul.f32 %v69, %v85
    %v102 = vmul.f32 %v70, %v86
    %v103 = vmul.f32 %v71, %v87
    %v104 = vmul.f32 %v72, %v88
    %v105 = vmul.f32 %v73, %v89
    %v106 = vmul.f32 %v74, %v90
    %v107 = vmul.f32 %v75, %v91
    %v108 = vmul.f32 %v76, %v92
    %v109 = vmul.f32 %v77, %v93
    %v110 = vmul.f32 %v78, %v94
    %v111 = vmul.f32 %v79, %v95
    %v112 = vmul.f32 %v80, %v96
    %v113 = vmul.f32 %v81, %v97
    %v114 = vmul.f32 %v82, %v98
    %v115 = vmul.f32 %v83, %v99
    %v116 = vmul.f32 %v84, %v100
    %117 = vmatprep.subr.mxu0 0.0
    %118 = vmatpush1.xpose.msra.mxu0 %v101
    %119 = vmatprep.subr.mxu0 0.0
    %120 = vmatpush1.xpose.msra.mxu0 %v102
    %121 = vmatprep.subr.mxu0 0.0
    %122 = vmatpush1.xpose.msra.mxu0 %v103
    %123 = vmatprep.subr.mxu0 0.0
    %124 = vmatpush1.xpose.msra.mxu0 %v104
    %125 = vmatprep.subr.mxu0 0.0
    %126 = vmatpush1.xpose.msra.mxu0 %v105
    %127 = vmatprep.subr.mxu0 0.0
    %128 = vmatpush1.xpose.msra.mxu0 %v106
    %129 = vmatprep.subr.mxu0 0.0
    %130 = vmatpush1.xpose.msra.mxu0 %v107
    %131 = vmatprep.subr.mxu0 0.0
    %132 = vmatpush1.xpose.msra.mxu0 %v108
    %133 = vmatprep.subr.mxu0 0.0
    %134 = vmatpush1.xpose.msra.mxu0 %v109
    %135 = vmatprep.subr.mxu0 0.0
    %136 = vmatpush1.xpose.msra.mxu0 %v110
    %137 = vmatprep.subr.mxu0 0.0
    %138 = vmatpush1.xpose.msra.mxu0 %v111
    %139 = vmatprep.subr.mxu0 0.0
    %140 = vmatpush1.xpose.msra.mxu0 %v112
    %141 = vmatprep.subr.mxu0 0.0
    %142 = vmatpush1.xpose.msra.mxu0 %v113
    %143 = vmatprep.subr.mxu0 0.0
    %144 = vmatpush1.xpose.msra.mxu0 %v114
    %145 = vmatprep.subr.mxu0 0.0
    %146 = vmatpush1.xpose.msra.mxu0 %v115
    %147 = vmatprep.subr.mxu0 0.0
    %148 = vmatpush1.xpose.msra.mxu0 %v116
    %149 = vmatprep.subr.mxu0 0.0
    %150 = vmatpush1.xpose.msra.mxu0 0.0
    %151 = vmatprep.subr.mxu0 0.0
    %152 = vmatpush1.xpose.msra.mxu0 0.0
    %153 = vmatprep.subr.mxu0 0.0
    %154 = vmatpush1.xpose.msra.mxu0 0.0
    %155 = vmatprep.subr.mxu0 0.0
    %156 = vmatpush1.xpose.msra.mxu0 0.0
    %157 = vmatprep.subr.mxu0 0.0
    %158 = vmatpush1.xpose.msra.mxu0 0.0
    %159 = vmatprep.subr.mxu0 0.0
    %160 = vmatpush1.xpose.msra.mxu0 0.0
    %161 = vmatprep.subr.mxu0 0.0
    %162 = vmatpush1.xpose.msra.mxu0 0.0
    %163 = vmatprep.subr.mxu0 0.0
    %164 = vmatpush1.xpose.msra.mxu0 0.0
    %165 = vmatprep.subr.mxu0 0.0
    %166 = vmatpush1.xpose.msra.mxu0 0.0
    %167 = vmatprep.subr.mxu0 0.0
    %168 = vmatpush1.xpose.msra.mxu0 0.0
    %169 = vmatprep.subr.mxu0 0.0
    %170 = vmatpush1.xpose.msra.mxu0 0.0
    %171 = vmatprep.subr.mxu0 0.0
    %172 = vmatpush1.xpose.msra.mxu0 0.0
    %173 = vmatprep.subr.mxu0 0.0
    %174 = vmatpush1.xpose.msra.mxu0 0.0
    %175 = vmatprep.subr.mxu0 0.0
    %176 = vmatpush1.xpose.msra.mxu0 0.0
    %177 = vmatprep.subr.mxu0 0.0
    %178 = vmatpush1.xpose.msra.mxu0 0.0
    %179 = vmatprep.subr.mxu0 0.0
    %180 = vmatpush1.xpose.msra.mxu0 0.0
    %181 = vmatprep.mubr.f32.mxu0 0.0
    %182 = vmatmul.mubr.f32.gmra.mrb[0].mxu0 1.0
    %v183 = vpop.f32.mrb[0].mxu0
    %v184 = vadd.f32 0.0, %v183
    %v185 = vpop.f32.mrb[0].mxu0
    %186 = vdwg.mxu0
    %187 = vst [vmem:[#allocation8] sm:$0x1] %v184
    // Predicated region
    $region24: #{tpu_custom_call.1} parent=1 // pred_check
      _
    $region25: #{tpu_custom_call.1} parent=1 // pred_check_branch
      %189 = sbr.rel (0) target = $region27
    $region26: #{tpu_custom_call.1} parent=1 // pred_region
      %s191 = ssub.s32 16, 16
      %192 = vsyncadd [#allocation9], %s191
      %s194 = sshll.u32 [#allocation8], 4
      %s195 = int_to_ptr.vmem [resolvable:$true] %s194
      %197 = dma.vmem_to_hbm [thread:$0]  %s195, 16, %s4, [#allocation9]
    $region27: #{tpu_custom_call.1} parent=1 // pred_fallthru
      _
    // Predicated region
    $region28: #{tpu_custom_call.1} parent=1 // pred_check
      _
    $region29: #{tpu_custom_call.1} parent=1 // pred_check_branch
      %199 = sbr.rel (0) target = $region31
    $region30: #{tpu_custom_call.1} parent=1 // pred_region
      %200 = dma.done [#allocation9], 16
    $region31: #{tpu_custom_call.1} parent=1 // pred_fallthru
      _
    %201 = vsyncpa [#allocation9], 1
  %202 = vsyncmov [#allocation4]
  %s203 = vpop.sfrf %202
  %p204 = scmp.eq.s32.totalorder %s203, 0
  %p205 = pneg %p204
  %207 = shalt.err (%p205)
  %s208 = scalar_lea.sflag [#allocation4], 1
  %209 = vsyncmov %s208
  %s210 = vpop.sfrf %209
  %p211 = scmp.eq.s32.totalorder %s210, 0
  %p212 = pneg %p211
  %214 = shalt.err (%p212)

</llo_original>
